<compile_context>
chip_gen: v5e
topology: v5e:2x2
jax: 0.10.0
libtpu: 0.0.40
codegen_flags: <defaults>
</compile_context>

<pallas_src>
import math

import jax
import jax.numpy as jnp
from jax.experimental import pallas as pl
from jax.experimental.pallas import tpu as pltpu

# ---------------- config (small, consistent with the module) ----------------
BATCH = 8
INPUT_SIZE = 48
INPUT_SIZE_FREQ = 32                     # -> input_splits = [32, 16] (rare path active)
INPUT_SIZE_RARE = INPUT_SIZE - INPUT_SIZE_FREQ
TAIL_HIDDEN = 16
HIDDEN_SIZES = (32, 32)                  # hidden_sizes[0], hidden_sizes[1]
OUTPUT_SIZE = 8

LANES = 128                              # TPU lane width; feature dims padded to this
# Row layout of the single packed slab (sublane-aligned boundaries):
_R0 = 0                                  # rows [0,   48)  : Wcat [48, 128]
_R1 = _R0 + INPUT_SIZE                   # rows [48, 176)  : Wm   [128, 128]
_R2 = _R1 + LANES                        # rows [176,304)  : Wl   [128, 128]
_R3 = _R2 + LANES                        # 304
_RB = _R3                                # rows [304,312)  : bias rows (3 used)
_SLAB_ROWS = _RB + 8                     # 312

_GAIN_RELU = math.sqrt(2.0)
_GAIN_SIGMOID = 1.0


# ------------------------------ Pallas kernel --------------------------------
def sparse_ffn_kernel(x_ref, w_ref, out_ref):
    """x_ref: [TB, 48] bf16; w_ref: [312, 128] bf16 packed weights+biases.

    Padding invariant: columns >= the true feature width of every layer are
    exactly zero in both weights and bias rows, so padded lanes stay zero
    through relu and contribute nothing to later matmuls -> math is exact up to
    bf16 input rounding (accumulation is f32).
    """
    x = x_ref[...]                                                   # [TB, 48] bf16

    wcat = w_ref[_R0:_R1, :]                                         # [48, 128]  bf16
    wm = w_ref[_R1:_R2, :]                                           # [128, 128] bf16
    wl = w_ref[_R2:_R3, :]                                           # [128, 128] bf16
    bcat = w_ref[_RB + 0:_RB + 1, :].astype(jnp.float32)             # [1, 128]
    bm = w_ref[_RB + 1:_RB + 2, :].astype(jnp.float32)
    bl = w_ref[_RB + 2:_RB + 3, :].astype(jnp.float32)

    # Fused SparseInputNet:  h0 = X @ Wcat + bcat            (cols 32: are 0)
    h0 = jnp.dot(x, wcat, preferred_element_type=jnp.float32) + bcat

    # MiddleNet layer_0: ReLU -> (Dropout=id) -> Linear       (cols 32: are 0)
    h1 = jnp.dot(jnp.maximum(h0, 0.0).astype(jnp.bfloat16), wm,
                 preferred_element_type=jnp.float32) + bm

    # LastNet: ReLU -> (Dropout=id) -> Linear                 (cols 8: are 0)
    out = jnp.dot(jnp.maximum(h1, 0.0).astype(jnp.bfloat16), wl,
                  preferred_element_type=jnp.float32) + bl

    out_ref[...] = out.astype(out_ref.dtype)                         # lane-dense store


# ------------------------------ wrapper ---------------------------------------
def pack_params(p):
    """Fold the rare path and pack everything into one lane-padded bf16 slab."""
    h0, h1, o = HIDDEN_SIZES[0], HIDDEN_SIZES[1], OUTPUT_SIZE

    # Algebraic fold of SparseInputNet (exact up to f32 reassociation):
    wr = p["wr1"] @ p["wr2"]                                  # [16, 32]
    wcat = jnp.concatenate([p["wf"], wr], axis=0)             # [48, 32]
    bcat = p["bf"] + p["br1"] @ p["wr2"]                      # [1, 32]

    slab = jnp.zeros((_SLAB_ROWS, LANES), jnp.float32)
    slab = slab.at[_R0:_R0 + INPUT_SIZE, :h0].set(wcat)
    slab = slab.at[_R1:_R1 + h0, :h1].set(p["wm"])
    slab = slab.at[_R2:_R2 + h1, :o].set(p["wl"])
    slab = slab.at[_RB + 0, :h0].set(bcat[0])
    slab = slab.at[_RB + 1, :h1].set(p["bm"][0])
    slab = slab.at[_RB + 2, :o].set(p["bl"][0])
    return slab.astype(jnp.bfloat16)                          # [312, 128] bf16


def _pick_batch_tile(b):
    """Batch tile: single full block for tiny batches; otherwise >=2 grid steps
    (megacore on v7x) with rows capped at 2048 (per-step overhead ~0.35us, live
    data even at 2048 rows is a few MiB << VMEM)."""
    if b <= 8:
        return b
    half = -(-b // 2)                     # ceil(b/2)
    tb = ((half + 7) // 8) * 8            # round up to sublane multiple
    return min(2048, tb)


def sparse_ffn_forward(x, w_slab):
    """x: [B, INPUT_SIZE] float32 -> [B, OUTPUT_SIZE] float32."""
    b = x.shape[0]
    x = x.astype(jnp.bfloat16)            # bf16 MXU path; accumulation stays f32
    tb = _pick_batch_tile(b)
    grid = (pl.cdiv(b, tb),)

    # No wrapper jnp.pad: rows are independent; a ragged last block (only
    # possible for large, non-divisible batches) has its OOB output rows
    # masked by Pallas and is never consumed.
    out_padded = pl.pallas_call(
        sparse_ffn_kernel,
        out_shape=jax.ShapeDtypeStruct((b, LANES), jnp.float32),
        grid=grid,
        in_specs=[
            pl.BlockSpec((tb, INPUT_SIZE), lambda i: (i, 0)),       # X: tiled over batch
            pl.BlockSpec((_SLAB_ROWS, LANES), lambda i: (0, 0)),    # slab: VMEM-resident
        ],
        out_specs=pl.BlockSpec((tb, LANES), lambda i: (i, 0)),      # lane-dense output
        compiler_params=pltpu.CompilerParams(
            dimension_semantics=("parallel",)),                     # megacore on v7x
    )(x, w_slab)

    return out_padded[:, :OUTPUT_SIZE]


# -------------------------- deterministic param init -------------------------
def _xavier_uniform(key, fan_in, fan_out, gain):
    a = gain * math.sqrt(6.0 / (fan_in + fan_out))
    return jax.random.uniform(key, (fan_in, fan_out), jnp.float32, -a, a)


def init_params(key):
    ks = jax.random.split(key, 5)
    params = {
        # SparseInputNet.net_freq : SparseLinear(freq -> hidden0), bias = 0.1
        "wf": _xavier_uniform(ks[0], INPUT_SIZE_FREQ, HIDDEN_SIZES[0], _GAIN_RELU),
        "bf": jnp.full((1, HIDDEN_SIZES[0]), 0.1, jnp.float32),
        # SparseInputNet.net_rare[0] : SparseLinear(rare -> tail_hidden), bias = 0.1
        "wr1": _xavier_uniform(ks[1], INPUT_SIZE_RARE, TAIL_HIDDEN, _GAIN_RELU),
        "br1": jnp.full((1, TAIL_HIDDEN), 0.1, jnp.float32),
        # SparseInputNet.net_rare[1] : Linear(tail_hidden -> hidden0, bias=False)
        "wr2": _xavier_uniform(ks[2], TAIL_HIDDEN, HIDDEN_SIZES[0], _GAIN_RELU),
        # MiddleNet layer_0 Linear(hidden0 -> hidden1), bias = 0.1
        "wm": _xavier_uniform(ks[3], HIDDEN_SIZES[0], HIDDEN_SIZES[1], _GAIN_RELU),
        "bm": jnp.full((1, HIDDEN_SIZES[1]), 0.1, jnp.float32),
        # LastNet Linear(hidden1 -> output), sigmoid gain, bias = 0.1
        "wl": _xavier_uniform(ks[4], HIDDEN_SIZES[1], OUTPUT_SIZE, _GAIN_SIGMOID),
        "bl": jnp.full((1, OUTPUT_SIZE), 0.1, jnp.float32),
    }
    return params


def reference_forward(x, p):
    """Original (unfused) module math in f32 — ground truth for semantics."""
    xf = x[:, :INPUT_SIZE_FREQ]
    xr = x[:, INPUT_SIZE_FREQ:]
    h0 = (xf @ p["wf"] + p["bf"]) + ((xr @ p["wr1"] + p["br1"]) @ p["wr2"])
    h1 = jnp.maximum(h0, 0.0) @ p["wm"] + p["bm"]
    return jnp.maximum(h1, 0.0) @ p["wl"] + p["bl"]


def emulated_forward(x, w_slab):
    """Plain-JAX replica of the kernel's exact bf16/f32 math (tight check)."""
    xb = x.astype(jnp.bfloat16)
    h0 = jnp.dot(xb, w_slab[_R0:_R1, :], preferred_element_type=jnp.float32) \
        + w_slab[_RB + 0:_RB + 1, :].astype(jnp.float32)
    h1 = jnp.dot(jnp.maximum(h0, 0.0).astype(jnp.bfloat16), w_slab[_R1:_R2, :],
                 preferred_element_type=jnp.float32) \
        + w_slab[_RB + 1:_RB + 2, :].astype(jnp.float32)
    out = jnp.dot(jnp.maximum(h1, 0.0).astype(jnp.bfloat16), w_slab[_R2:_R3, :],
                  preferred_element_type=jnp.float32) \
        + w_slab[_RB + 2:_RB + 3, :].astype(jnp.float32)
    return out[:, :OUTPUT_SIZE]


# ------------------------------------ main ------------------------------------
if __name__ == "__main__":
    key = jax.random.PRNGKey(0)
    k_x, k_p = jax.random.split(key)

    x = jax.random.normal(k_x, (BATCH, INPUT_SIZE), jnp.float32)
    params = init_params(k_p)
    w_slab = pack_params(params)

    out = sparse_ffn_forward(x, w_slab)
    out = jax.block_until_ready(out)
    assert out.shape == (BATCH, OUTPUT_SIZE)

    # Tight check: kernel vs identical bf16/f32 math in plain JAX.
    emu = emulated_forward(x, w_slab)
    assert jnp.allclose(out, emu, atol=2e-3, rtol=2e-3), \
        "Pallas output mismatch vs bf16-emulated math"

    # Semantics check: vs the original f32 module math. Inputs/weights are
    # rounded to bf16 (accumulation stays f32), so use a bf16-appropriate
    # tolerance.
    ref = reference_forward(x, params)
    assert jnp.allclose(out, ref, atol=1.5e-1, rtol=1e-1), \
        "Pallas output mismatch vs f32 reference"

    print("KERNEL_OK")
</pallas_src>

<mosaic_0001>
module attributes {stable_mosaic.version = 11 : i64} {
  func.func @sparse_ffn_kernel(%arg0: i32, %arg1: memref<8x48xbf16, #tpu.memory_space<vmem>>, %arg2: memref<312x128xbf16, #tpu.memory_space<vmem>>, %arg3: memref<8x128xf32, #tpu.memory_space<vmem>>) attributes {dimension_semantics = [#tpu.dimension_semantics<parallel>], iteration_bounds = array<i64: 1>, scalar_prefetch = 0 : i64, scratch_operands = 0 : i64, tpu.core_type = #tpu.core_type<tc>, window_params = [{transform_indices = @transform_0, window_bounds = array<i64: 8, 48>}, {pipeline_mode = #tpu.pipeline_mode<synchronous>, transform_indices = @transform_1, window_bounds = array<i64: 312, 128>}, {transform_indices = @transform_2, window_bounds = array<i64: 8, 128>}]} {
    %c0 = arith.constant 0 : index
    %c0_0 = arith.constant 0 : index
    %0 = vector.load %arg1[%c0, %c0_0] : memref<8x48xbf16, #tpu.memory_space<vmem>>, vector<8x48xbf16>
    %c0_1 = arith.constant 0 : index
    %c0_2 = arith.constant 0 : index
    %1 = vector.load %arg2[%c0_1, %c0_2] : memref<312x128xbf16, #tpu.memory_space<vmem>>, vector<48x128xbf16>
    %c48 = arith.constant 48 : index
    %c0_3 = arith.constant 0 : index
    %2 = vector.load %arg2[%c48, %c0_3] : memref<312x128xbf16, #tpu.memory_space<vmem>>, vector<128x128xbf16>
    %c176 = arith.constant 176 : index
    %c0_4 = arith.constant 0 : index
    %3 = vector.load %arg2[%c176, %c0_4] : memref<312x128xbf16, #tpu.memory_space<vmem>>, vector<128x128xbf16>
    %c304 = arith.constant 304 : index
    %c0_5 = arith.constant 0 : index
    %4 = vector.load %arg2[%c304, %c0_5] : memref<312x128xbf16, #tpu.memory_space<vmem>>, vector<1x128xbf16>
    %5 = arith.extf %4 : vector<1x128xbf16> to vector<1x128xf32>
    %c305 = arith.constant 305 : index
    %c0_6 = arith.constant 0 : index
    %6 = vector.load %arg2[%c305, %c0_6] : memref<312x128xbf16, #tpu.memory_space<vmem>>, vector<1x128xbf16>
    %7 = arith.extf %6 : vector<1x128xbf16> to vector<1x128xf32>
    %c306 = arith.constant 306 : index
    %c0_7 = arith.constant 0 : index
    %8 = vector.load %arg2[%c306, %c0_7] : memref<312x128xbf16, #tpu.memory_space<vmem>>, vector<1x128xbf16>
    %9 = arith.extf %8 : vector<1x128xbf16> to vector<1x128xf32>
    %cst = arith.constant dense<0.000000e+00> : vector<8x128xf32>
    %10 = tpu.matmul %0, %1, %cst {dimension_numbers = #tpu.dot_dimension_numbers<[1], [0], [0], [1], [0, 0, 1, 1], [], []>} : vector<8x48xbf16>, vector<48x128xbf16>, vector<8x128xf32> -> vector<8x128xf32>
    %11 = vector.broadcast %5 : vector<1x128xf32> to vector<8x128xf32>
    %12 = arith.addf %10, %11 : vector<8x128xf32>
    %cst_8 = arith.constant 0.000000e+00 : f32
    %13 = vector.broadcast %cst_8 : f32 to vector<8x128xf32>
    %14 = arith.maximumf %12, %13 : vector<8x128xf32>
    %15 = arith.truncf %14 : vector<8x128xf32> to vector<8x128xbf16>
    %cst_9 = arith.constant dense<0.000000e+00> : vector<8x128xf32>
    %16 = tpu.matmul %15, %2, %cst_9 {dimension_numbers = #tpu.dot_dimension_numbers<[1], [0], [0], [1], [0, 0, 1, 1], [], []>} : vector<8x128xbf16>, vector<128x128xbf16>, vector<8x128xf32> -> vector<8x128xf32>
    %17 = vector.broadcast %7 : vector<1x128xf32> to vector<8x128xf32>
    %18 = arith.addf %16, %17 : vector<8x128xf32>
    %cst_10 = arith.constant 0.000000e+00 : f32
    %19 = vector.broadcast %cst_10 : f32 to vector<8x128xf32>
    %20 = arith.maximumf %18, %19 : vector<8x128xf32>
    %21 = arith.truncf %20 : vector<8x128xf32> to vector<8x128xbf16>
    %cst_11 = arith.constant dense<0.000000e+00> : vector<8x128xf32>
    %22 = tpu.matmul %21, %3, %cst_11 {dimension_numbers = #tpu.dot_dimension_numbers<[1], [0], [0], [1], [0, 0, 1, 1], [], []>} : vector<8x128xbf16>, vector<128x128xbf16>, vector<8x128xf32> -> vector<8x128xf32>
    %23 = vector.broadcast %9 : vector<1x128xf32> to vector<8x128xf32>
    %24 = arith.addf %22, %23 : vector<8x128xf32>
    %c0_12 = arith.constant 0 : index
    %c0_13 = arith.constant 0 : index
    %25 = vector.load %arg3[%c0_12, %c0_13] : memref<8x128xf32, #tpu.memory_space<vmem>>, vector<8x128xf32>
    tpu.vector_store %arg3[%c0_12, %c0_13], %24 {strides = array<i32>} : memref<8x128xf32, #tpu.memory_space<vmem>>, vector<8x128xf32>,
    return
  }
  func.func @transform_0(%arg0: i32) -> (i32, i32) {
    %c0_i32 = arith.constant 0 : i32
    %c0_i32_0 = arith.constant 0 : i32
    return %arg0, %c0_i32 : i32, i32
  }
  func.func @transform_1(%arg0: i32) -> (i32, i32) {
    %c0_i32 = arith.constant 0 : i32
    %c0_i32_0 = arith.constant 0 : i32
    %c0_i32_1 = arith.constant 0 : i32
    return %c0_i32, %c0_i32_0 : i32, i32
  }
  func.func @transform_2(%arg0: i32) -> (i32, i32) {
    %c0_i32 = arith.constant 0 : i32
    %c0_i32_0 = arith.constant 0 : i32
    return %arg0, %c0_i32 : i32, i32
  }
}

</mosaic_0001>

<llo_original>
// kernel: tpu_custom_call.1
$region0: #{tpu_custom_call.1}
  #allocation0 [shape = 'u32[]', space=smem, size = 0x4, offset = 0x4, fixed_abs, tag = 'smem constant byte address 0x4 - core index']
  #allocation1 [shape = 'u32[72,128]{1,0:T(1,128)}', space=vmem, size = 0x9000, scoped, tag = 'internal scratch']
  %s0 = inlined_call_operand.hbm [shape: bf16[8,48], index: 0, kind: input, shape index: {}]
  %s1 = inlined_call_operand.hbm [shape: bf16[312,128], index: 1, kind: input, shape index: {}]
  %s2 = inlined_call_operand.hbm [shape: f32[8,128], index: 2, kind: output, shape index: {}]
  %s3 = sld [smem:[#allocation0]]
  $region26: #{tpu_custom_call.1} parent=0
    _
  %s5 = ssub.s32 1, %s3
  %s6 = scalar_select 0, %s5, %s3
  $region1: #{tpu_custom_call.1} parent=0
    #allocation2 [shape = 'u8[2048]{0}', space=vmem, size = 0x800, scoped, tag = 'input window, operand 0, single buffered']
    #allocation3 [shape = 's32[1]{0}', space=sflag, size = 0x4, scoped, tag = 'scoped memory for tpu_custom_call.1']
    #allocation4 [shape = 's32[1]{0}', space=sflag, size = 0x4, scoped, tag = 'scoped memory for tpu_custom_call.1']
    #allocation5 [shape = 'u8[79872]{0}', space=vmem, size = 0x13800, scoped, tag = 'input window, operand 1, single buffered']
    #allocation6 [shape = 's32[1]{0}', space=sflag, size = 0x4, scoped, tag = 'scoped memory for tpu_custom_call.1']
    #allocation7 [shape = 'u8[4096]{0}', space=vmem, size = 0x1000, scoped, tag = 'output window, operand 0, single buffered']
    %7 = vsyncpa [#allocation3], 0
    %8 = vsyncpa [#allocation6], 0
    %9 = vsyncpa [#allocation4], 0
    // Predicated region
    $region2: #{tpu_custom_call.1} parent=1 // pred_check
      _
    $region3: #{tpu_custom_call.1} parent=1 // pred_check_branch
      %11 = sbr.rel (0) target = $region5
    $region4: #{tpu_custom_call.1} parent=1 // pred_region
      %13 = vsyncadd [#allocation3], 0
      %s15 = sshll.u32 %s0, 4
      %s16 = int_to_ptr.hbm [resolvable:$true] %s15
      %s17 = sshll.u32 [#allocation2], 4
      %s18 = int_to_ptr.vmem [resolvable:$true] %s17
      %20 = dma.hbm_to_vmem [thread:$0]  %s16, 64, %s18, [#allocation3]
    $region5: #{tpu_custom_call.1} parent=1 // pred_fallthru
      _
    // Predicated region
    $region6: #{tpu_custom_call.1} parent=1 // pred_check
      _
    $region7: #{tpu_custom_call.1} parent=1 // pred_check_branch
      %22 = sbr.rel (0) target = $region9
    $region8: #{tpu_custom_call.1} parent=1 // pred_region
      %24 = vsyncadd [#allocation6], 0
      %s25 = sshll.u32 %s1, 4
      %s26 = int_to_ptr.hbm [resolvable:$true] %s25
      %s27 = sshll.u32 [#allocation5], 4
      %s28 = int_to_ptr.vmem [resolvable:$true] %s27
      %33 = dma.hbm_to_vmem [thread:$0]  %s26, 2496, %s28, [#allocation6], 64, 64, 4
    $region9: #{tpu_custom_call.1} parent=1 // pred_fallthru
      _
    // Predicated region
    $region10: #{tpu_custom_call.1} parent=1 // pred_check
      _
    $region11: #{tpu_custom_call.1} parent=1 // pred_check_branch
      %35 = sbr.rel (0) target = $region13
    $region12: #{tpu_custom_call.1} parent=1 // pred_region
      %37 = dma.done [#allocation3], 64
    $region13: #{tpu_custom_call.1} parent=1 // pred_fallthru
      _
    // Predicated region
    $region14: #{tpu_custom_call.1} parent=1 // pred_check
      _
    $region15: #{tpu_custom_call.1} parent=1 // pred_check_branch
      %39 = sbr.rel (0) target = $region17
    $region16: #{tpu_custom_call.1} parent=1 // pred_region
      %41 = dma.done [#allocation6], 2496
    $region17: #{tpu_custom_call.1} parent=1 // pred_fallthru
      _
    %v43 = vld [vmem:[#allocation2] sm:$0xf]
    %v44 = vld [vmem:[#allocation5] sm:$0xf]
    %v45 = vld [vmem:[#allocation5 + $0x4] sm:$0xf]
    %v46 = vld [vmem:[#allocation5 + $0x8] sm:$0xf]
    %v47 = vld [vmem:[#allocation5 + $0xc] sm:$0xf]
    %v48 = vld [vmem:[#allocation5 + $0x10] sm:$0xf]
    %v49 = vld [vmem:[#allocation5 + $0x14] sm:$0xf]
    %v50 = vld [vmem:[#allocation5 + $0x18] sm:$0xf]
    %v51 = vld [vmem:[#allocation5 + $0x1c] sm:$0xf]
    %v52 = vld [vmem:[#allocation5 + $0x20] sm:$0xf]
    %v53 = vld [vmem:[#allocation5 + $0x24] sm:$0xf]
    %v54 = vld [vmem:[#allocation5 + $0x28] sm:$0xf]
    %v55 = vld [vmem:[#allocation5 + $0x2c] sm:$0xf]
    %v56 = vld [vmem:[#allocation5 + $0x30] sm:$0xf]
    %v57 = vld [vmem:[#allocation5 + $0x34] sm:$0xf]
    %v58 = vld [vmem:[#allocation5 + $0x38] sm:$0xf]
    %v59 = vld [vmem:[#allocation5 + $0x3c] sm:$0xf]
    %v60 = vld [vmem:[#allocation5 + $0x40] sm:$0xf]
    %v61 = vld [vmem:[#allocation5 + $0x44] sm:$0xf]
    %v62 = vld [vmem:[#allocation5 + $0x48] sm:$0xf]
    %v63 = vld [vmem:[#allocation5 + $0x4c] sm:$0xf]
    %v64 = vld [vmem:[#allocation5 + $0x50] sm:$0xf]
    %v65 = vld [vmem:[#allocation5 + $0x54] sm:$0xf]
    %v66 = vld [vmem:[#allocation5 + $0x58] sm:$0xf]
    %v67 = vld [vmem:[#allocation5 + $0x5c] sm:$0xf]
    %v68 = vld [vmem:[#allocation5 + $0x60] sm:$0xf]
    %v69 = vld [vmem:[#allocation5 + $0x64] sm:$0xf]
    %v70 = vld [vmem:[#allocation5 + $0x68] sm:$0xf]
    %v71 = vld [vmem:[#allocation5 + $0x6c] sm:$0xf]
    %v72 = vld [vmem:[#allocation5 + $0x70] sm:$0xf]
    %v73 = vld [vmem:[#allocation5 + $0x74] sm:$0xf]
    %v74 = vld [vmem:[#allocation5 + $0x78] sm:$0xf]
    %v75 = vld [vmem:[#allocation5 + $0x7c] sm:$0xf]
    %v76 = vld [vmem:[#allocation5 + $0x80] sm:$0xf]
    %v77 = vld [vmem:[#allocation5 + $0x84] sm:$0xf]
    %v78 = vld [vmem:[#allocation5 + $0x88] sm:$0xf]
    %v79 = vld [vmem:[#allocation5 + $0x8c] sm:$0xf]
    %v80 = vld [vmem:[#allocation5 + $0x90] sm:$0xf]
    %v81 = vld [vmem:[#allocation5 + $0x94] sm:$0xf]
    %v82 = vld [vmem:[#allocation5 + $0x98] sm:$0x1]
    %v83 = vunpack.c.l.bf16 %v82
    %v84 = vld [vmem:[#allocation5 + $0x98] sm:$0x2]
    %v85 = vunpack.c.l.bf16 %v84
    %v86 = vperm.slane %v83, 0
    %v93 = vunpack.c.l.b16 %v44
    %v94 = vunpack.c.l.b16 %v45
    %v95 = vunpack.c.l.b16 %v46
    %v96 = vunpack.c.l.b16 %v47
    %v97 = vunpack.c.l.b16 %v48
    %v98 = vunpack.c.l.b16 %v49
    %v99 = vpack.c.b16 %v94, %v93
    %v100 = vpack.c.b16 %v96, %v95
    %v101 = vpack.c.b16 %v98, %v97
    %vm105 = vcmask 392192
    %v107 = vsel %vm105, %v43, 0
    %109 = vmatpush.bf16.msra.mxu0 0
    %110 = vmatpush.bf16.msra.mxu0 0
    %111 = vmatpush.bf16.msra.mxu0 0
    %112 = vmatpush.bf16.msra.mxu0 0
    %113 = vmatpush.bf16.msra.mxu0 0
    %114 = vmatpush.bf16.msra.mxu0 %v101
    %115 = vmatpush.bf16.msra.mxu0 %v100
    %116 = vmatpush.bf16.msra.mxu0 %v99
    %117 = vmatmul.bf16.gmra.mxu0 %v107
    %v118 = vpop.f32.mrf.mxu0
    %v119 = vadd.f32 %v86, %v118
    %v120 = vpop.f32.mrf.mxu0
    %121 = vdwg.mxu0
    %v122 = vmax.f32 %v119, 0.0
    %v123 = vpack.c.bf16 %v122, %v122
    %v124 = vperm.slane %v83, 1
    %v141 = vunpack.c.l.b16 %v50
    %v142 = vunpack.c.l.b16 %v51
    %v143 = vunpack.c.l.b16 %v52
    %v144 = vunpack.c.l.b16 %v53
    %v145 = vunpack.c.l.b16 %v54
    %v146 = vunpack.c.l.b16 %v55
    %v147 = vunpack.c.l.b16 %v56
    %v148 = vunpack.c.l.b16 %v57
    %v149 = vunpack.c.l.b16 %v58
    %v150 = vunpack.c.l.b16 %v59
    %v151 = vunpack.c.l.b16 %v60
    %v152 = vunpack.c.l.b16 %v61
    %v153 = vunpack.c.l.b16 %v62
    %v154 = vunpack.c.l.b16 %v63
    %v155 = vunpack.c.l.b16 %v64
    %v156 = vunpack.c.l.b16 %v65
    %v157 = vpack.c.b16 %v142, %v141
    %v158 = vpack.c.b16 %v144, %v143
    %v159 = vpack.c.b16 %v146, %v145
    %v160 = vpack.c.b16 %v148, %v147
    %v161 = vpack.c.b16 %v150, %v149
    %v162 = vpack.c.b16 %v152, %v151
    %v163 = vpack.c.b16 %v154, %v153
    %v164 = vpack.c.b16 %v156, %v155
    %173 = vmatpush.bf16.msra.mxu0 %v164
    %174 = vmatpush.bf16.msra.mxu0 %v163
    %175 = vmatpush.bf16.msra.mxu0 %v162
    %176 = vmatpush.bf16.msra.mxu0 %v161
    %177 = vmatpush.bf16.msra.mxu0 %v160
    %178 = vmatpush.bf16.msra.mxu0 %v159
    %179 = vmatpush.bf16.msra.mxu0 %v158
    %180 = vmatpush.bf16.msra.mxu0 %v157
    %181 = vmatmul.bf16.gmra.mxu0 %v123
    %v182 = vpop.f32.mrf.mxu0
    %v183 = vadd.f32 %v124, %v182
    %v184 = vpop.f32.mrf.mxu0
    %185 = vdwg.mxu0
    %v186 = vmax.f32 %v183, 0.0
    %v187 = vpack.c.bf16 %v186, %v186
    %v188 = vperm.slane %v85, 2
    %v205 = vunpack.c.l.b16 %v66
    %v206 = vunpack.c.l.b16 %v67
    %v207 = vunpack.c.l.b16 %v68
    %v208 = vunpack.c.l.b16 %v69
    %v209 = vunpack.c.l.b16 %v70
    %v210 = vunpack.c.l.b16 %v71
    %v211 = vunpack.c.l.b16 %v72
    %v212 = vunpack.c.l.b16 %v73
    %v213 = vunpack.c.l.b16 %v74
    %v214 = vunpack.c.l.b16 %v75
    %v215 = vunpack.c.l.b16 %v76
    %v216 = vunpack.c.l.b16 %v77
    %v217 = vunpack.c.l.b16 %v78
    %v218 = vunpack.c.l.b16 %v79
    %v219 = vunpack.c.l.b16 %v80
    %v220 = vunpack.c.l.b16 %v81
    %v221 = vpack.c.b16 %v206, %v205
    %v222 = vpack.c.b16 %v208, %v207
    %v223 = vpack.c.b16 %v210, %v209
    %v224 = vpack.c.b16 %v212, %v211
    %v225 = vpack.c.b16 %v214, %v213
    %v226 = vpack.c.b16 %v216, %v215
    %v227 = vpack.c.b16 %v218, %v217
    %v228 = vpack.c.b16 %v220, %v219
    %237 = vmatpush.bf16.msra.mxu0 %v228
    %238 = vmatpush.bf16.msra.mxu0 %v227
    %239 = vmatpush.bf16.msra.mxu0 %v226
    %240 = vmatpush.bf16.msra.mxu0 %v225
    %241 = vmatpush.bf16.msra.mxu0 %v224
    %242 = vmatpush.bf16.msra.mxu0 %v223
    %243 = vmatpush.bf16.msra.mxu0 %v222
    %244 = vmatpush.bf16.msra.mxu0 %v221
    %245 = vmatmul.bf16.gmra.mxu0 %v187
    %v246 = vpop.f32.mrf.mxu0
    %v247 = vadd.f32 %v188, %v246
    %v248 = vpop.f32.mrf.mxu0
    %249 = vdwg.mxu0
    %250 = vst [vmem:[#allocation7] sm:$0xff] %v247
    // Predicated region
    $region18: #{tpu_custom_call.1} parent=1 // pred_check
      _
    $region19: #{tpu_custom_call.1} parent=1 // pred_check_branch
      %252 = sbr.rel (0) target = $region21
    $region20: #{tpu_custom_call.1} parent=1 // pred_region
      %254 = vsyncadd [#allocation4], 0
      %s256 = sshll.u32 [#allocation7], 4
      %s257 = int_to_ptr.vmem [resolvable:$true] %s256
      %s258 = sshll.u32 %s2, 4
      %s259 = int_to_ptr.hbm [resolvable:$true] %s258
      %261 = dma.vmem_to_hbm [thread:$0]  %s257, 128, %s259, [#allocation4]
    $region21: #{tpu_custom_call.1} parent=1 // pred_fallthru
      _
    // Predicated region
    $region22: #{tpu_custom_call.1} parent=1 // pred_check
      _
    $region23: #{tpu_custom_call.1} parent=1 // pred_check_branch
      %263 = sbr.rel (0) target = $region25
    $region24: #{tpu_custom_call.1} parent=1 // pred_region
      %265 = dma.done [#allocation4], 128
    $region25: #{tpu_custom_call.1} parent=1 // pred_fallthru
      _
    %266 = vsyncpa [#allocation3], 1
    %267 = vsyncpa [#allocation6], 1
    %268 = vsyncpa [#allocation4], 1

</llo_original>
